<compile_context>
chip_gen: v7x
topology: tpu7x:2x2x1
jax: 0.10.0
libtpu: 0.0.40
codegen_flags: <defaults>
</compile_context>

<pallas_src>
import jax
import jax.numpy as jnp
from jax.experimental import pallas as pl
from jax.experimental.pallas import tpu as pltpu

EPS = 1e-5


def _round_up(a, b):
    return (a + b - 1) // b * b


# ---------------------------------------------------------------------------
# Pass 1: fused Q/K/V projection + per-tile partial sum / sum-of-squares.
#   x_ref:     (TM, C_in)        bf16  (row tile, pipelined)
#   wqkv_ref:  (C_in, 3*C_mid)   bf16  (VMEM-resident across grid steps)
#   stats_ref: (1, 2, 3*C_mid)   f32   per-tile partial [sum; sum_of_squares]
# H is NOT written to HBM — it is recomputed in pass 2.
# ---------------------------------------------------------------------------
def qkv_stats_kernel(x_ref, wqkv_ref, stats_ref):
    h = jnp.dot(x_ref[...], wqkv_ref[...], preferred_element_type=jnp.float32)
    ssum = jnp.sum(h, axis=0, keepdims=True)        # (1, 3*C_mid)
    ssq = jnp.sum(h * h, axis=0, keepdims=True)     # (1, 3*C_mid)
    stats = jnp.concatenate([ssum, ssq], axis=0)    # (2, 3*C_mid)
    stats_ref[...] = stats.reshape(stats_ref.shape)


# ---------------------------------------------------------------------------
# Pass 2: recompute H, folded BN + ReLU, softmax(Q*K, axis=1) * V,
#         output linear + bias + ReLU.
# ---------------------------------------------------------------------------
def bn_attn_out_kernel(x_ref, wqkv_ref, scale_ref, shift_ref, wo_ref, bo_ref,
                       o_ref):
    c3 = wqkv_ref.shape[1]
    c_mid = c3 // 3

    # Recompute H on the MXU (cheaper than an HBM round trip).
    h = jnp.dot(x_ref[...], wqkv_ref[...], preferred_element_type=jnp.float32)

    # Folded BatchNorm (single FMA with precomputed scale/shift) + ReLU, f32.
    hn = jnp.maximum(h * scale_ref[...] + shift_ref[...], 0.0)

    # Static lane slices -> Q, K, V.
    q = hn[:, :c_mid]
    k = hn[:, c_mid:2 * c_mid]
    v = hn[:, 2 * c_mid:]

    # o = softmax(Q * K, dim=1) * V   (softmax over the feature axis).
    qk = q * k
    m = jnp.max(qk, axis=1, keepdims=True)
    e = jnp.exp(qk - m)
    s = jnp.sum(e, axis=1, keepdims=True)
    attn = e * pl.reciprocal(s, approx=True)
    o = attn * v

    # Output linear (bf16 MXU operands, f32 accumulation) + bias + ReLU.
    out = jnp.dot(o.astype(jnp.bfloat16), wo_ref[...],
                  preferred_element_type=jnp.float32)
    out = out + bo_ref[...]
    o_ref[...] = jnp.maximum(out, 0.0).astype(o_ref.dtype)


# ---------------------------------------------------------------------------
# Wrapper
# ---------------------------------------------------------------------------
def gnn_unit_forward(x, params, *, row_tile=512):
    """params: wq/wk/wv (C_in, C_mid) pre-transposed, gq/bq/gk/bk/gv/bv (1, C_mid),
    wo (C_mid, C_out) pre-transposed, bo (1, C_out); all f32."""
    n, c_in = x.shape
    c_mid, c_out = params["wo"].shape
    c3 = 3 * c_mid

    # Pack Q/K/V params once; weights -> bf16 for the MXU, BN vectors stay f32.
    wqkv = jnp.concatenate([params["wq"], params["wk"], params["wv"]],
                           axis=1).astype(jnp.bfloat16)           # (C_in, 3*C_mid)
    gqkv = jnp.concatenate([params["gq"], params["gk"], params["gv"]], axis=1)
    bqkv = jnp.concatenate([params["bq"], params["bk"], params["bv"]], axis=1)
    wo = params["wo"].astype(jnp.bfloat16)
    bo = params["bo"]

    # Row tiling: big tiles for DMA/MXU efficiency, but cap the per-tile f32
    # working set (~tm * 3*C_mid * 4 bytes) so it is safe on v7x's 64 MiB VMEM.
    max_tm_vmem = max(16, ((12 << 20) // (4 * c3)) // 16 * 16)
    tm = max(16, (min(row_tile, max_tm_vmem, _round_up(n, 16)) // 16) * 16)
    n_pad = _round_up(n, tm)
    # Zero-padded rows contribute exactly zero to the BN sums (0 @ W = 0) and
    # their outputs are sliced off at the end.
    x_bf = x.astype(jnp.bfloat16)
    if n_pad != n:
        x_bf = jnp.pad(x_bf, ((0, n_pad - n), (0, 0)))
    num_tiles = n_pad // tm

    rows = lambda shape: pl.BlockSpec(shape, lambda i: (i, 0))
    const = lambda shape: pl.BlockSpec(shape, lambda i: (0, 0))  # VMEM-resident

    # ---- pass 1: per-tile partial BN statistics (parallel over row tiles) ---
    stats = pl.pallas_call(
        qkv_stats_kernel,
        out_shape=jax.ShapeDtypeStruct((num_tiles, 2, c3), jnp.float32),
        grid=(num_tiles,),
        in_specs=[rows((tm, c_in)), const((c_in, c3))],
        out_specs=pl.BlockSpec((1, 2, c3), lambda i: (i, 0, 0)),
        compiler_params=pltpu.CompilerParams(
            dimension_semantics=("parallel",),
            vmem_limit_bytes=40 << 20),
    )(x_bf, wqkv)

    # Tiny reduce + fold BatchNorm1d (training mode, biased batch variance)
    # into per-feature scale / shift vectors.
    totals = jnp.sum(stats, axis=0)                     # (2, 3*C_mid)
    mean = totals[0:1] / n
    var = jnp.maximum(totals[1:2] / n - mean * mean, 0.0)
    scale = gqkv * jax.lax.rsqrt(var + EPS)
    shift = bqkv - mean * scale

    # ---- pass 2: recompute H, normalize + attention + output layer ----------
    out = pl.pallas_call(
        bn_attn_out_kernel,
        out_shape=jax.ShapeDtypeStruct((n_pad, c_out), x.dtype),
        grid=(num_tiles,),
        in_specs=[rows((tm, c_in)), const((c_in, c3)),
                  const((1, c3)), const((1, c3)),
                  const((c_mid, c_out)), const((1, c_out))],
        out_specs=rows((tm, c_out)),
        compiler_params=pltpu.CompilerParams(
            dimension_semantics=("parallel",),
            vmem_limit_bytes=40 << 20),
    )(x_bf, wqkv, scale, shift, wo, bo)

    return out[:n]


# ---------------------------------------------------------------------------
# Plain-JAX reference (mirrors the PyTorch forward, training-mode BN).
# MXU operands are rounded through bf16 exactly as the kernel does.
# ---------------------------------------------------------------------------
def reference_forward(x, p):
    f32 = jnp.float32
    rt = lambda a: a.astype(jnp.bfloat16).astype(f32)
    xb = rt(x)

    def branch(w, g, b):
        h = xb @ rt(w)
        mean = jnp.mean(h, axis=0, keepdims=True)
        var = jnp.mean((h - mean) ** 2, axis=0, keepdims=True)
        hn = (h - mean) * jax.lax.rsqrt(var + EPS) * g + b
        return jnp.maximum(hn, 0.0)

    Q = branch(p["wq"], p["gq"], p["bq"])
    K = branch(p["wk"], p["gk"], p["bk"])
    V = branch(p["wv"], p["gv"], p["bv"])
    o = jax.nn.softmax(Q * K, axis=1) * V
    out = rt(o) @ rt(p["wo"]) + p["bo"]
    return jnp.maximum(out, 0.0)


def make_params(key, c_in, c_mid, c_out, dtype=jnp.float32):
    """Kaiming-normal (fan_in) Linear weights, BN weight=1 / bias=0,
    output bias=0 — matching the module's __init__."""
    kq, kk, kv, ko = jax.random.split(key, 4)

    def kaiming(k, fan_in, shape):
        std = (2.0 / fan_in) ** 0.5
        return (std * jax.random.normal(k, shape)).astype(dtype)

    return {
        # stored pre-transposed: (in_features, out_features)
        "wq": kaiming(kq, c_in, (c_in, c_mid)),
        "wk": kaiming(kk, c_in, (c_in, c_mid)),
        "wv": kaiming(kv, c_in, (c_in, c_mid)),
        "wo": kaiming(ko, c_mid, (c_mid, c_out)),
        "gq": jnp.ones((1, c_mid), dtype), "bq": jnp.zeros((1, c_mid), dtype),
        "gk": jnp.ones((1, c_mid), dtype), "bk": jnp.zeros((1, c_mid), dtype),
        "gv": jnp.ones((1, c_mid), dtype), "bv": jnp.zeros((1, c_mid), dtype),
        "bo": jnp.zeros((1, c_out), dtype),
    }


if __name__ == "__main__":
    # Small shapes consistent with the module: x is (batch, in_channels).
    N, C_IN, C_MID, C_OUT = 64, 128, 256, 128

    key = jax.random.PRNGKey(0)
    kx, kp = jax.random.split(key)
    x = jax.random.normal(kx, (N, C_IN), dtype=jnp.float32)
    params = make_params(kp, C_IN, C_MID, C_OUT)

    # row_tile=32 -> a 2-step grid: exercises resident weights, pipelining and
    # the per-tile partial-stats reduction.  (Production default is 512.)
    out = gnn_unit_forward(x, params, row_tile=32)
    out = jax.block_until_ready(out)

    ref = reference_forward(x, params)
    assert out.shape == (N, C_OUT)
    assert jnp.allclose(out, ref, atol=2e-3, rtol=2e-2), "mismatch vs reference"

    print("KERNEL_OK")
</pallas_src>

<mosaic_0001>
module attributes {stable_mosaic.version = 11 : i64} {
  func.func @qkv_stats_kernel(%arg0: i32, %arg1: memref<32x128xbf16, #tpu.memory_space<vmem>>, %arg2: memref<128x768xbf16, #tpu.memory_space<vmem>>, %arg3: memref<1x2x768xf32, #tpu.memory_space<vmem>>) attributes {dimension_semantics = [#tpu.dimension_semantics<parallel>], iteration_bounds = array<i64: 2>, scalar_prefetch = 0 : i64, scratch_operands = 0 : i64, tpu.core_type = #tpu.core_type<tc>, window_params = [{transform_indices = @transform_0, window_bounds = array<i64: 32, 128>}, {pipeline_mode = #tpu.pipeline_mode<synchronous>, transform_indices = @transform_1, window_bounds = array<i64: 128, 768>}, {transform_indices = @transform_2, window_bounds = array<i64: 1, 2, 768>}]} {
    %c0 = arith.constant 0 : index
    %c0_0 = arith.constant 0 : index
    %0 = vector.load %arg1[%c0, %c0_0] : memref<32x128xbf16, #tpu.memory_space<vmem>>, vector<32x128xbf16>
    %c0_1 = arith.constant 0 : index
    %c0_2 = arith.constant 0 : index
    %1 = vector.load %arg2[%c0_1, %c0_2] : memref<128x768xbf16, #tpu.memory_space<vmem>>, vector<128x768xbf16>
    %cst = arith.constant dense<0.000000e+00> : vector<32x768xf32>
    %2 = tpu.matmul %0, %1, %cst {dimension_numbers = #tpu.dot_dimension_numbers<[1], [0], [0], [1], [0, 0, 1, 1], [], []>} : vector<32x128xbf16>, vector<128x768xbf16>, vector<32x768xf32> -> vector<32x768xf32>
    %cst_3 = arith.constant dense<0.000000e+00> : vector<768xf32>
    %3 = vector.multi_reduction <add>, %2, %cst_3 [0] : vector<32x768xf32> to vector<768xf32>
    %4 = vector.shape_cast %3 : vector<768xf32> to vector<1x768xf32>
    %5 = arith.mulf %2, %2 : vector<32x768xf32>
    %cst_4 = arith.constant dense<0.000000e+00> : vector<768xf32>
    %6 = vector.multi_reduction <add>, %5, %cst_4 [0] : vector<32x768xf32> to vector<768xf32>
    %7 = vector.shape_cast %6 : vector<768xf32> to vector<1x768xf32>
    %8 = tpu.concatenate %4, %7 in 0 : vector<1x768xf32>, vector<1x768xf32> -> vector<2x768xf32>
    %9 = vector.shape_cast %8 : vector<2x768xf32> to vector<1x2x768xf32>
    %c0_5 = arith.constant 0 : index
    %c0_6 = arith.constant 0 : index
    %c0_7 = arith.constant 0 : index
    %10 = vector.load %arg3[%c0_5, %c0_6, %c0_7] : memref<1x2x768xf32, #tpu.memory_space<vmem>>, vector<1x2x768xf32>
    tpu.vector_store %arg3[%c0_5, %c0_6, %c0_7], %9 {strides = array<i32>} : memref<1x2x768xf32, #tpu.memory_space<vmem>>, vector<1x2x768xf32>,
    return
  }
  func.func @transform_0(%arg0: i32) -> (i32, i32) {
    %c0_i32 = arith.constant 0 : i32
    %c0_i32_0 = arith.constant 0 : i32
    return %arg0, %c0_i32 : i32, i32
  }
  func.func @transform_1(%arg0: i32) -> (i32, i32) {
    %c0_i32 = arith.constant 0 : i32
    %c0_i32_0 = arith.constant 0 : i32
    %c0_i32_1 = arith.constant 0 : i32
    return %c0_i32, %c0_i32_0 : i32, i32
  }
  func.func @transform_2(%arg0: i32) -> (i32, i32, i32) {
    %c0_i32 = arith.constant 0 : i32
    %c0_i32_0 = arith.constant 0 : i32
    %c0_i32_1 = arith.constant 0 : i32
    return %arg0, %c0_i32, %c0_i32_0 : i32, i32, i32
  }
}

</mosaic_0001>

<llo_original>
// kernel: tpu_custom_call.1
$region0: #{tpu_custom_call.1}
  #allocation0 [shape = 'u32[]', space=smem, size = 0x4, offset = 0x4, fixed_abs, tag = 'smem constant byte address 0x4 - core index']
  #allocation1 [shape = 'u32[144,128]{1,0:T(1,128)}', space=vmem, size = 0x12000, scoped, tag = 'internal scratch']
  %s0 = inlined_call_operand.hbm [shape: bf16[64,128], index: 0, kind: input, shape index: {}]
  %s1 = inlined_call_operand.hbm [shape: bf16[128,768], index: 1, kind: input, shape index: {}]
  %s2 = inlined_call_operand.hbm [shape: f32[2,2,768], index: 2, kind: output, shape index: {}]
  %s3 = sld [smem:[#allocation0]]
  $region49: #{tpu_custom_call.1} parent=0
    _
  %s5 = ssub.s32 1, %s3
  %s6 = scalar_select 0, %s5, %s3
  $region1: #{tpu_custom_call.1} parent=0
    #allocation2 [shape = 'u8[16384]{0}', space=vmem, size = 0x4000, scoped, tag = 'input window, operand 0']
    #allocation3 [shape = 's32[2]{0}', space=sflag, size = 0x8, scoped, tag = 'scoped memory for tpu_custom_call.1']
    #allocation4 [shape = 's32[2]{0}', space=sflag, size = 0x8, scoped, tag = 'scoped memory for tpu_custom_call.1']
    #allocation5 [shape = 'u8[196608]{0}', space=vmem, size = 0x30000, scoped, tag = 'input window, operand 1, single buffered']
    #allocation6 [shape = 's32[1]{0}', space=sflag, size = 0x4, scoped, tag = 'scoped memory for tpu_custom_call.1']
    #allocation7 [shape = 'u8[12288]{0}', space=vmem, size = 0x3000, scoped, tag = 'output window, operand 0']
    %7 = vsyncpa [#allocation3], 0
    %s8 = scalar_lea.sflag [#allocation3], 1
    %9 = vsyncpa %s8, 0
    %10 = vsyncpa [#allocation6], 0
    %11 = vsyncpa [#allocation4], 0
    %s12 = scalar_lea.sflag [#allocation4], 1
    %13 = vsyncpa %s12, 0
    loop: start=0, step=1, limit=4
    $region2: #{tpu_custom_call.1} parent=1 // loop_pre_header
      _
    $region3: #{tpu_custom_call.1} parent=1 // loop_header
      %s15 = sphi 0, %s19
      %p16 = scmp.ge.s32.totalorder %s15, 4
      %s25 = sphi 0, %s27
      %s28 = sphi 0, %s25
      %s29 = sphi 0, %s28
      %s45 = sphi 0, %s29
      %s49 = sphi 0, %s49
      %s51 = sphi 0, %s49
      %s52 = sphi 0, %s51
      %s66 = sphi 0, %s52
      %s72 = sphi 0, %s74
      %s75 = sphi 0, %s72
      %s76 = sphi 0, %s75
      %s92 = sphi 0, %s76
    $region4: #{tpu_custom_call.1} parent=1 // loop_header_branch
      %18 = sbr.rel (%p16) target = $region8
    $region5: #{tpu_custom_call.1} parent=1 // loop_body
      %s20 = ssub.s32 %s15, 1
      %s21 = ssub.s32 %s15, 2
      %s22 = sadd.s32 %s15, 1
      %s23 = ssub.s32 %s15, %s22
      %p24 = scmp.eq.s32.totalorder %s23, 0
      %s26 = sadd.s32 %s25, 1
      %s27 = scalar_select %p24, %s25, %s26
      %p30 = pneg %p24
      %p31 = scmp.eq.s32.totalorder %s15, 1
      %p32 = por %p30, %p31
      %p33 = scmp.ne.s32.totalorder %s25, %s28
      %p34 = scmp.eq.s32.totalorder %s15, 0
      %p35 = por %p33, %p34
      %p36 = scmp.ne.s32.totalorder %s25, %s28
      %p37 = scmp.eq.s32.totalorder %s20, 1
      %p38 = por %p36, %p37
      %p39 = scmp.ne.s32.totalorder %s28, %s29
      %p40 = scmp.eq.s32.totalorder %s20, 0
      %p41 = por %p39, %p40
      %p42 = scmp.ne.s32.totalorder %s28, %s29
      %p43 = scmp.eq.s32.totalorder %s21, 1
      %p44 = por %p42, %p43
      %p46 = scmp.ne.s32.totalorder %s29, %s45
      %p47 = scmp.eq.s32.totalorder %s21, 0
      %p48 = por %p46, %p47
      %s50 = sadd.s32 %s49, 1
      %p53 = scmp.eq.s32.totalorder %s15, 1
      %p54 = scmp.ne.s32.totalorder %s49, %s51
      %p55 = scmp.eq.s32.totalorder %s15, 0
      %p56 = por %p54, %p55
      %p57 = scmp.ne.s32.totalorder %s49, %s51
      %p58 = scmp.eq.s32.totalorder %s20, 1
      %p59 = por %p57, %p58
      %p60 = scmp.ne.s32.totalorder %s51, %s52
      %p61 = scmp.eq.s32.totalorder %s20, 0
      %p62 = por %p60, %p61
      %p63 = scmp.ne.s32.totalorder %s51, %s52
      %p64 = scmp.eq.s32.totalorder %s21, 1
      %p65 = por %p63, %p64
      %p67 = scmp.ne.s32.totalorder %s52, %s66
      %p68 = scmp.eq.s32.totalorder %s21, 0
      %p69 = por %p67, %p68
      %s70 = ssub.s32 %s15, %s22
      %p71 = scmp.eq.s32.totalorder %s70, 0
      %s73 = sadd.s32 %s72, 1
      %s74 = scalar_select %p71, %s72, %s73
      %p77 = pneg %p71
      %p78 = scmp.eq.s32.totalorder %s15, 1
      %p79 = por %p77, %p78
      %p80 = scmp.ne.s32.totalorder %s72, %s75
      %p81 = scmp.eq.s32.totalorder %s15, 0
      %p82 = por %p80, %p81
      %p83 = scmp.ne.s32.totalorder %s72, %s75
      %p84 = scmp.eq.s32.totalorder %s20, 1
      %p85 = por %p83, %p84
      %p86 = scmp.ne.s32.totalorder %s75, %s76
      %p87 = scmp.eq.s32.totalorder %s20, 0
      %p88 = por %p86, %p87
      %p89 = scmp.ne.s32.totalorder %s75, %s76
      %p90 = scmp.eq.s32.totalorder %s21, 1
      %p91 = por %p89, %p90
      %p93 = scmp.ne.s32.totalorder %s76, %s92
      %p94 = scmp.eq.s32.totalorder %s21, 0
      %p95 = por %p93, %p94
      %p96 = scmp.le.s32.totalorder 1, %s15
      %p97 = scmp.lt.s32.totalorder %s15, 3
      %p98 = pnand %p96, %p97
      %p99 = pneg %p98
      // Predicated region
      $region9: #{tpu_custom_call.1} parent=5 // pred_check
        _
      $region10: #{tpu_custom_call.1} parent=5 // pred_check_branch
        %101 = sbr.rel (%p98) target = $region12
      $region11: #{tpu_custom_call.1} parent=5 // pred_region
        %s102 = ssub.s32 %s15, 1
        // Predicated region
        $region13: #{tpu_custom_call.1} parent=11 // pred_check
          %p103 = pneg %p62
        $region14: #{tpu_custom_call.1} parent=11 // pred_check_branch
          %105 = sbr.rel (%p103) target = $region16
        $region15: #{tpu_custom_call.1} parent=11 // pred_region
          %s107 = ssub.s32 6144, 6144
          %108 = vsyncadd [#allocation6], %s107
          %s109 = sshll.u32 [#allocation5], 4
          %s110 = int_to_ptr.vmem [resolvable:$true] %s109
          %115 = dma.hbm_to_vmem [thread:$0]  %s1, 6144, %s110, [#allocation6], 384, 384, 24
        $region16: #{tpu_custom_call.1} parent=11 // pred_fallthru
          _
      $region12: #{tpu_custom_call.1} parent=5 // pred_fallthru
        _
      %p116 = scmp.lt.s32.totalorder %s15, 2
      // Predicated region
      $region17: #{tpu_custom_call.1} parent=5 // pred_check
        %p117 = pneg %p116
      $region18: #{tpu_custom_call.1} parent=5 // pred_check_branch
        %119 = sbr.rel (%p117) target = $region20
      $region19: #{tpu_custom_call.1} parent=5 // pred_region
        // Predicated region
        $region21: #{tpu_custom_call.1} parent=19 // pred_check
          %p120 = pneg %p35
        $region22: #{tpu_custom_call.1} parent=19 // pred_check_branch
          %122 = sbr.rel (%p120) target = $region24
        $region23: #{tpu_custom_call.1} parent=19 // pred_region
          %s123 = sand.u32 %s25, 1
          %s124 = scalar_lea.sflag [#allocation3], %s123
          %s125 = sand.u32 %s25, 1
          %s126 = smul.addr %s125, 16
          %s127 = scalar_lea.vmem [#allocation2], %s126
          %s128 = smul.u32 4, %s15
          %s130 = ssub.s32 256, 256
          %131 = vsyncadd %s124, %s130
          %s132 = smul.addr %s128, 64
          %s133 = scalar_lea.hbm %s0, %s132
          %s134 = sshll.u32 %s127, 4
          %s135 = int_to_ptr.vmem [resolvable:$true] %s134
          %140 = dma.hbm_to_vmem [thread:$0]  %s133, 256, %s135, %s124, 64, 64, 4
        $region24: #{tpu_custom_call.1} parent=19 // pred_fallthru
          _
      $region20: #{tpu_custom_call.1} parent=5 // pred_fallthru
        _
      %p141 = scmp.le.s32.totalorder 1, %s15
      %p142 = scmp.lt.s32.totalorder %s15, 3
      %p143 = pnand %p141, %p142
      %p144 = pneg %p143
      // Predicated region
      $region25: #{tpu_custom_call.1} parent=5 // pred_check
        _
      $region26: #{tpu_custom_call.1} parent=5 // pred_check_branch
        %146 = sbr.rel (%p143) target = $region28
      $region27: #{tpu_custom_call.1} parent=5 // pred_region
        %s147 = ssub.s32 %s15, 1
        %s148 = sand.u32 %s28, 1
        %s149 = scalar_lea.sflag [#allocation3], %s148
        %s150 = sand.u32 %s28, 1
        %s151 = smul.addr %s150, 16
        %s152 = scalar_lea.vmem [#allocation2], %s151
        // Predicated region
        $region29: #{tpu_custom_call.1} parent=27 // pred_check
          %p153 = pneg %p41
        $region30: #{tpu_custom_call.1} parent=27 // pred_check_branch
          %155 = sbr.rel (%p153) target = $region32
        $region31: #{tpu_custom_call.1} parent=27 // pred_region
          %156 = dma.done %s149, 256
        $region32: #{tpu_custom_call.1} parent=27 // pred_fallthru
          _
        // Predicated region
        $region33: #{tpu_custom_call.1} parent=27 // pred_check
          %p157 = pneg %p62
        $region34: #{tpu_custom_call.1} parent=27 // pred_check_branch
          %159 = sbr.rel (%p157) target = $region36
        $region35: #{tpu_custom_call.1} parent=27 // pred_region
          %160 = dma.done [#allocation6], 6144
        $region36: #{tpu_custom_call.1} parent=27 // pred_fallthru
          _
        %s161 = sand.u32 %s28, 1
        %s162 = scalar_lea.sflag [#allocation3], %s161
        %s163 = sand.u32 %s28, 1
        %s164 = smul.addr %s163, 16
        %s165 = scalar_lea.vmem [#allocation2], %s164
        %p166 = pneg %p41
        %p167 = pneg %p38
        %p168 = pneg %p62
        %p169 = pneg %p59
        %p170 = pneg %p88
        %p171 = pneg %p85
        %s172 = sand.u32 %s75, 1
        %s173 = scalar_lea.sflag [#allocation4], %s172
        %s174 = sand.u32 %s75, 1
        %s175 = smul.addr %s174, 12
        %s176 = scalar_lea.vmem [#allocation7], %s175
        %s177 = smul.u32 4, %s20
        %v179 = vld [vmem:[%s152] sm:$0xf]
        %v180 = vld [vmem:[%s152 + $0x4] sm:$0xf]
        %v181 = vld [vmem:[%s152 + $0x8] sm:$0xf]
        %v182 = vld [vmem:[%s152 + $0xc] sm:$0xf]
        %v183 = vld [vmem:[#allocation5] sm:$0xff]
        %v184 = vld [vmem:[#allocation5 + $0x8] sm:$0xff]
        %v185 = vld [vmem:[#allocation5 + $0x10] sm:$0xff]
        %v186 = vld [vmem:[#allocation5 + $0x18] sm:$0xff]
        %v187 = vld [vmem:[#allocation5 + $0x20] sm:$0xff]
        %v188 = vld [vmem:[#allocation5 + $0x28] sm:$0xff]
        %v189 = vld [vmem:[#allocation5 + $0x30] sm:$0xff]
        %v190 = vld [vmem:[#allocation5 + $0x38] sm:$0xff]
        %v191 = vld [vmem:[#allocation5 + $0x40] sm:$0xff]
        %v192 = vld [vmem:[#allocation5 + $0x48] sm:$0xff]
        %v193 = vld [vmem:[#allocation5 + $0x50] sm:$0xff]
        %v194 = vld [vmem:[#allocation5 + $0x58] sm:$0xff]
        %v195 = vld [vmem:[#allocation5 + $0x60] sm:$0xff]
        %v196 = vld [vmem:[#allocation5 + $0x68] sm:$0xff]
        %v197 = vld [vmem:[#allocation5 + $0x70] sm:$0xff]
        %v198 = vld [vmem:[#allocation5 + $0x78] sm:$0xff]
        %v199 = vld [vmem:[#allocation5 + $0x80] sm:$0xff]
        %v200 = vld [vmem:[#allocation5 + $0x88] sm:$0xff]
        %v201 = vld [vmem:[#allocation5 + $0x90] sm:$0xff]
        %v202 = vld [vmem:[#allocation5 + $0x98] sm:$0xff]
        %v203 = vld [vmem:[#allocation5 + $0xa0] sm:$0xff]
        %v204 = vld [vmem:[#allocation5 + $0xa8] sm:$0xff]
        %v205 = vld [vmem:[#allocation5 + $0xb0] sm:$0xff]
        %v206 = vld [vmem:[#allocation5 + $0xb8] sm:$0xff]
        %v207 = vld [vmem:[#allocation5 + $0xc0] sm:$0xff]
        %v208 = vld [vmem:[#allocation5 + $0xc8] sm:$0xff]
        %v209 = vld [vmem:[#allocation5 + $0xd0] sm:$0xff]
        %v210 = vld [vmem:[#allocation5 + $0xd8] sm:$0xff]
        %v211 = vld [vmem:[#allocation5 + $0xe0] sm:$0xff]
        %v212 = vld [vmem:[#allocation5 + $0xe8] sm:$0xff]
        %v213 = vld [vmem:[#allocation5 + $0xf0] sm:$0xff]
        %v214 = vld [vmem:[#allocation5 + $0xf8] sm:$0xff]
        %v215 = vld [vmem:[#allocation5 + $0x100] sm:$0xff]
        %v216 = vld [vmem:[#allocation5 + $0x108] sm:$0xff]
        %v217 = vld [vmem:[#allocation5 + $0x110] sm:$0xff]
        %v218 = vld [vmem:[#allocation5 + $0x118] sm:$0xff]
        %v219 = vld [vmem:[#allocation5 + $0x120] sm:$0xff]
        %v220 = vld [vmem:[#allocation5 + $0x128] sm:$0xff]
        %v221 = vld [vmem:[#allocation5 + $0x130] sm:$0xff]
        %v222 = vld [vmem:[#allocation5 + $0x138] sm:$0xff]
        %v223 = vld [vmem:[#allocation5 + $0x140] sm:$0xff]
        %v224 = vld [vmem:[#allocation5 + $0x148] sm:$0xff]
        %v225 = vld [vmem:[#allocation5 + $0x150] sm:$0xff]
        %v226 = vld [vmem:[#allocation5 + $0x158] sm:$0xff]
        %v227 = vld [vmem:[#allocation5 + $0x160] sm:$0xff]
        %v228 = vld [vmem:[#allocation5 + $0x168] sm:$0xff]
        %v229 = vld [vmem:[#allocation5 + $0x170] sm:$0xff]
        %v230 = vld [vmem:[#allocation5 + $0x178] sm:$0xff]
        %v235 = vunpack.c.l.b16 %v179
        %v236 = vunpack.c.l.b16 %v180
        %v237 = vunpack.c.l.b16 %v181
        %v238 = vunpack.c.l.b16 %v182
        %v239 = vpack.c.b16 %v236, %v235
        %v240 = vpack.c.b16 %v238, %v237
        %v291 = vunpack.c.l.b16 %v183
        %v292 = vunpack.c.h.b16 %v183
        %v293 = vunpack.c.l.b16 %v184
        %v294 = vunpack.c.h.b16 %v184
        %v295 = vunpack.c.l.b16 %v185
        %v296 = vunpack.c.h.b16 %v185
        %v297 = vunpack.c.l.b16 %v186
        %v298 = vunpack.c.h.b16 %v186
        %v299 = vunpack.c.l.b16 %v187
        %v300 = vunpack.c.h.b16 %v187
        %v301 = vunpack.c.l.b16 %v188
        %v302 = vunpack.c.h.b16 %v188
        %v303 = vunpack.c.l.b16 %v189
        %v304 = vunpack.c.h.b16 %v189
        %v305 = vunpack.c.l.b16 %v190
        %v306 = vunpack.c.h.b16 %v190
        %v307 = vunpack.c.l.b16 %v191
        %v308 = vunpack.c.h.b16 %v191
        %v309 = vunpack.c.l.b16 %v192
        %v310 = vunpack.c.h.b16 %v192
        %v311 = vunpack.c.l.b16 %v193
        %v312 = vunpack.c.h.b16 %v193
        %v313 = vunpack.c.l.b16 %v194
        %v314 = vunpack.c.h.b16 %v194
        %v315 = vunpack.c.l.b16 %v195
        %v316 = vunpack.c.h.b16 %v195
        %v317 = vunpack.c.l.b16 %v196
        %v318 = vunpack.c.h.b16 %v196
        %v319 = vunpack.c.l.b16 %v197
        %v320 = vunpack.c.h.b16 %v197
        %v321 = vunpack.c.l.b16 %v198
        %v322 = vunpack.c.h.b16 %v198
        %v323 = vunpack.c.l.b16 %v199
        %v324 = vunpack.c.h.b16 %v199
        %v325 = vunpack.c.l.b16 %v200
        %v326 = vunpack.c.h.b16 %v200
        %v327 = vunpack.c.l.b16 %v201
        %v328 = vunpack.c.h.b16 %v201
        %v329 = vunpack.c.l.b16 %v202
        %v330 = vunpack.c.h.b16 %v202
        %v331 = vunpack.c.l.b16 %v203
        %v332 = vunpack.c.h.b16 %v203
        %v333 = vunpack.c.l.b16 %v204
        %v334 = vunpack.c.h.b16 %v204
        %v335 = vunpack.c.l.b16 %v205
        %v336 = vunpack.c.h.b16 %v205
        %v337 = vunpack.c.l.b16 %v206
        %v338 = vunpack.c.h.b16 %v206
        %v339 = vunpack.c.l.b16 %v207
        %v340 = vunpack.c.h.b16 %v207
        %v341 = vunpack.c.l.b16 %v208
        %v342 = vunpack.c.h.b16 %v208
        %v343 = vunpack.c.l.b16 %v209
        %v344 = vunpack.c.h.b16 %v209
        %v345 = vunpack.c.l.b16 %v210
        %v346 = vunpack.c.h.b16 %v210
        %v347 = vunpack.c.l.b16 %v211
        %v348 = vunpack.c.h.b16 %v211
        %v349 = vunpack.c.l.b16 %v212
        %v350 = vunpack.c.h.b16 %v212
        %v351 = vunpack.c.l.b16 %v213
        %v352 = vunpack.c.h.b16 %v213
        %v353 = vunpack.c.l.b16 %v214
        %v354 = vunpack.c.h.b16 %v214
        %v355 = vunpack.c.l.b16 %v215
        %v356 = vunpack.c.h.b16 %v215
        %v357 = vunpack.c.l.b16 %v216
        %v358 = vunpack.c.h.b16 %v216
        %v359 = vunpack.c.l.b16 %v217
        %v360 = vunpack.c.h.b16 %v217
        %v361 = vunpack.c.l.b16 %v218
        %v362 = vunpack.c.h.b16 %v218
        %v363 = vunpack.c.l.b16 %v219
        %v364 = vunpack.c.h.b16 %v219
        %v365 = vunpack.c.l.b16 %v220
        %v366 = vunpack.c.h.b16 %v220
        %v367 = vunpack.c.l.b16 %v221
        %v368 = vunpack.c.h.b16 %v221
        %v369 = vunpack.c.l.b16 %v222
        %v370 = vunpack.c.h.b16 %v222
        %v371 = vunpack.c.l.b16 %v223
        %v372 = vunpack.c.h.b16 %v223
        %v373 = vunpack.c.l.b16 %v224
        %v374 = vunpack.c.h.b16 %v224
        %v375 = vunpack.c.l.b16 %v225
        %v376 = vunpack.c.h.b16 %v225
        %v377 = vunpack.c.l.b16 %v226
        %v378 = vunpack.c.h.b16 %v226
        %v379 = vunpack.c.l.b16 %v227
        %v380 = vunpack.c.h.b16 %v227
        %v381 = vunpack.c.l.b16 %v228
        %v382 = vunpack.c.h.b16 %v228
        %v383 = vunpack.c.l.b16 %v229
        %v384 = vunpack.c.h.b16 %v229
        %v385 = vunpack.c.l.b16 %v230
        %v386 = vunpack.c.h.b16 %v230
        %v387 = vpack.c.b16 %v297, %v291
        %v388 = vpack.c.b16 %v298, %v292
        %v389 = vpack.c.b16 %v299, %v293
        %v390 = vpack.c.b16 %v300, %v294
        %v391 = vpack.c.b16 %v301, %v295
        %v392 = vpack.c.b16 %v302, %v296
        %v393 = vpack.c.b16 %v309, %v303
        %v394 = vpack.c.b16 %v310, %v304
        %v395 = vpack.c.b16 %v311, %v305
        %v396 = vpack.c.b16 %v312, %v306
        %v397 = vpack.c.b16 %v313, %v307
        %v398 = vpack.c.b16 %v314, %v308
        %v399 = vpack.c.b16 %v321, %v315
        %v400 = vpack.c.b16 %v322, %v316
        %v401 = vpack.c.b16 %v323, %v317
        %v402 = vpack.c.b16 %v324, %v318
        %v403 = vpack.c.b16 %v325, %v319
        %v404 = vpack.c.b16 %v326, %v320
        %v405 = vpack.c.b16 %v333, %v327
        %v406 = vpack.c.b16 %v334, %v328
        %v407 = vpack.c.b16 %v335, %v329
        %v408 = vpack.c.b16 %v336, %v330
        %v409 = vpack.c.b16 %v337, %v331
        %v410 = vpack.c.b16 %v338, %v332
        %v411 = vpack.c.b16 %v345, %v339
        %v412 = vpack.c.b16 %v346, %v340
        %v413 = vpack.c.b16 %v347, %v341
        %v414 = vpack.c.b16 %v348, %v342
        %v415 = vpack.c.b16 %v349, %v343
        %v416 = vpack.c.b16 %v350, %v344
        %v417 = vpack.c.b16 %v357, %v351
        %v418 = vpack.c.b16 %v358, %v352
        %v419 = vpack.c.b16 %v359, %v353
        %v420 = vpack.c.b16 %v360, %v354
        %v421 = vpack.c.b16 %v361, %v355
        %v422 = vpack.c.b16 %v362, %v356
        %v423 = vpack.c.b16 %v369, %v363
        %v424 = vpack.c.b16 %v370, %v364
        %v425 = vpack.c.b16 %v371, %v365
        %v426 = vpack.c.b16 %v372, %v366
        %v427 = vpack.c.b16 %v373, %v367
        %v428 = vpack.c.b16 %v374, %v368
        %v429 = vpack.c.b16 %v381, %v375
        %v430 = vpack.c.b16 %v382, %v376
        %v431 = vpack.c.b16 %v383, %v377
        %v432 = vpack.c.b16 %v384, %v378
        %v433 = vpack.c.b16 %v385, %v379
        %v434 = vpack.c.b16 %v386, %v380
        %483 = vmatprep.subr.bf16.mxu0 %v388
        %484 = vmatpush1.bf16.msra.mxu0 %v387
        %485 = vmatprep.subr.bf16.mxu0 %v394
        %486 = vmatpush1.bf16.msra.mxu0 %v393
        %487 = vmatprep.subr.bf16.mxu0 %v400
        %488 = vmatpush1.bf16.msra.mxu0 %v399
        %489 = vmatprep.subr.bf16.mxu0 %v406
        %490 = vmatpush1.bf16.msra.mxu0 %v405
        %491 = vmatprep.subr.bf16.mxu0 %v412
        %492 = vmatpush1.bf16.msra.mxu0 %v411
        %493 = vmatprep.subr.bf16.mxu0 %v418
        %494 = vmatpush1.bf16.msra.mxu0 %v417
        %495 = vmatprep.subr.bf16.mxu0 %v424
        %496 = vmatpush1.bf16.msra.mxu0 %v423
        %497 = vmatprep.subr.bf16.mxu0 %v430
        %498 = vmatpush1.bf16.msra.mxu0 %v429
        %499 = vmatprep.subr.bf16.mxu0 0
        %500 = vmatpush1.bf16.msra.mxu0 0
        %501 = vmatprep.subr.bf16.mxu0 0
        %502 = vmatpush1.bf16.msra.mxu0 0
        %503 = vmatprep.subr.bf16.mxu0 0
        %504 = vmatpush1.bf16.msra.mxu0 0
        %505 = vmatprep.subr.bf16.mxu0 0
        %506 = vmatpush1.bf16.msra.mxu0 0
        %507 = vmatprep.subr.bf16.mxu0 0
        %508 = vmatpush1.bf16.msra.mxu0 0
        %509 = vmatprep.subr.bf16.mxu0 0
        %510 = vmatpush1.bf16.msra.mxu0 0
        %511 = vmatprep.subr.bf16.mxu0 0
        %512 = vmatpush1.bf16.msra.mxu0 0
        %513 = vmatprep.subr.bf16.mxu0 0
        %514 = vmatpush1.bf16.msra.mxu0 0
        %515 = vmatprep.mubr.bf16.mxu0 0
        %516 = vmatmul.mubr.bf16.gmra.mrb[0].mxu0 %v239
        %v517 = vpop.f32.mrb[0].mxu0
        %v518 = vadd.f32 0.0, %v517
        %v519 = vpop.f32.mrb[0].mxu0
        %v520 = vadd.f32 0.0, %v519
        %v521 = vpop.f32.mrb[0].mxu0
        %v522 = vadd.f32 0.0, %v521
        %v523 = vpop.f32.mrb[0].mxu0
        %v524 = vadd.f32 0.0, %v523
        %525 = vmatprep.mubr.bf16.mxu0 0
        %526 = vmatmul.mubr.bf16.gmra.mrb[0].mxu0 %v240
        %v527 = vpop.f32.mrb[0].mxu0
        %v528 = vadd.f32 0.0, %v527
        %v529 = vpop.f32.mrb[0].mxu0
        %v530 = vadd.f32 0.0, %v529
        %v531 = vpop.f32.mrb[0].mxu0
        %v532 = vadd.f32 0.0, %v531
        %v533 = vpop.f32.mrb[0].mxu0
        %v534 = vadd.f32 0.0, %v533
        %535 = vdwg.mxu0
        %536 = vmatprep.subr.bf16.mxu0 %v390
        %537 = vmatpush1.bf16.msra.mxu0 %v389
        %538 = vmatprep.subr.bf16.mxu0 %v396
        %539 = vmatpush1.bf16.msra.mxu0 %v395
        %540 = vmatprep.subr.bf16.mxu0 %v402
        %541 = vmatpush1.bf16.msra.mxu0 %v401
        %542 = vmatprep.subr.bf16.mxu0 %v408
        %543 = vmatpush1.bf16.msra.mxu0 %v407
        %544 = vmatprep.subr.bf16.mxu0 %v414
        %545 = vmatpush1.bf16.msra.mxu0 %v413
        %546 = vmatprep.subr.bf16.mxu0 %v420
        %547 = vmatpush1.bf16.msra.mxu0 %v419
        %548 = vmatprep.subr.bf16.mxu0 %v426
        %549 = vmatpush1.bf16.msra.mxu0 %v425
        %550 = vmatprep.subr.bf16.mxu0 %v432
        %551 = vmatpush1.bf16.msra.mxu0 %v431
        %552 = vmatprep.subr.bf16.mxu0 0
        %553 = vmatpush1.bf16.msra.mxu0 0
        %554 = vmatprep.subr.bf16.mxu0 0
        %555 = vmatpush1.bf16.msra.mxu0 0
        %556 = vmatprep.subr.bf16.mxu0 0
        %557 = vmatpush1.bf16.msra.mxu0 0
        %558 = vmatprep.subr.bf16.mxu0 0
        %559 = vmatpush1.bf16.msra.mxu0 0
        %560 = vmatprep.subr.bf16.mxu0 0
        %561 = vmatpush1.bf16.msra.mxu0 0
        %562 = vmatprep.subr.bf16.mxu0 0
        %563 = vmatpush1.bf16.msra.mxu0 0
        %564 = vmatprep.subr.bf16.mxu0 0
        %565 = vmatpush1.bf16.msra.mxu0 0
        %566 = vmatprep.subr.bf16.mxu0 0
        %567 = vmatpush1.bf16.msra.mxu0 0
        %568 = vmatprep.mubr.bf16.mxu0 0
        %569 = vmatmul.mubr.bf16.gmra.mrb[0].mxu0 %v239
        %v570 = vpop.f32.mrb[0].mxu0
        %v571 = vadd.f32 0.0, %v570
        %v572 = vpop.f32.mrb[0].mxu0
        %v573 = vadd.f32 0.0, %v572
        %v574 = vpop.f32.mrb[0].mxu0
        %v575 = vadd.f32 0.0, %v574
        %v576 = vpop.f32.mrb[0].mxu0
        %v577 = vadd.f32 0.0, %v576
        %578 = vmatprep.mubr.bf16.mxu0 0
        %579 = vmatmul.mubr.bf16.gmra.mrb[0].mxu0 %v240
        %v580 = vpop.f32.mrb[0].mxu0
        %v581 = vadd.f32 0.0, %v580
        %v582 = vpop.f32.mrb[0].mxu0
        %v583 = vadd.f32 0.0, %v582
        %v584 = vpop.f32.mrb[0].mxu0
        %v585 = vadd.f32 0.0, %v584
        %v586 = vpop.f32.mrb[0].mxu0
        %v587 = vadd.f32 0.0, %v586
        %588 = vdwg.mxu0
        %589 = vmatprep.subr.bf16.mxu0 %v392
        %590 = vmatpush1.bf16.msra.mxu0 %v391
        %591 = vmatprep.subr.bf16.mxu0 %v398
        %592 = vmatpush1.bf16.msra.mxu0 %v397
        %593 = vmatprep.subr.bf16.mxu0 %v404
        %594 = vmatpush1.bf16.msra.mxu0 %v403
        %595 = vmatprep.subr.bf16.mxu0 %v410
        %596 = vmatpush1.bf16.msra.mxu0 %v409
        %597 = vmatprep.subr.bf16.mxu0 %v416
        %598 = vmatpush1.bf16.msra.mxu0 %v415
        %599 = vmatprep.subr.bf16.mxu0 %v422
        %600 = vmatpush1.bf16.msra.mxu0 %v421
        %601 = vmatprep.subr.bf16.mxu0 %v428
        %602 = vmatpush1.bf16.msra.mxu0 %v427
        %603 = vmatprep.subr.bf16.mxu0 %v434
        %604 = vmatpush1.bf16.msra.mxu0 %v433
        %605 = vmatprep.subr.bf16.mxu0 0
        %606 = vmatpush1.bf16.msra.mxu0 0
        %607 = vmatprep.subr.bf16.mxu0 0
        %608 = vmatpush1.bf16.msra.mxu0 0
        %609 = vmatprep.subr.bf16.mxu0 0
        %610 = vmatpush1.bf16.msra.mxu0 0
        %611 = vmatprep.subr.bf16.mxu0 0
        %612 = vmatpush1.bf16.msra.mxu0 0
        %613 = vmatprep.subr.bf16.mxu0 0
        %614 = vmatpush1.bf16.msra.mxu0 0
        %615 = vmatprep.subr.bf16.mxu0 0
        %616 = vmatpush1.bf16.msra.mxu0 0
        %617 = vmatprep.subr.bf16.mxu0 0
        %618 = vmatpush1.bf16.msra.mxu0 0
        %619 = vmatprep.subr.bf16.mxu0 0
        %620 = vmatpush1.bf16.msra.mxu0 0
        %621 = vmatprep.mubr.bf16.mxu0 0
        %622 = vmatmul.mubr.bf16.gmra.mrb[0].mxu0 %v239
        %v623 = vpop.f32.mrb[0].mxu0
        %v624 = vadd.f32 0.0, %v623
        %v625 = vpop.f32.mrb[0].mxu0
        %v626 = vadd.f32 0.0, %v625
        %v627 = vpop.f32.mrb[0].mxu0
        %v628 = vadd.f32 0.0, %v627
        %v629 = vpop.f32.mrb[0].mxu0
        %v630 = vadd.f32 0.0, %v629
        %631 = vmatprep.mubr.bf16.mxu0 0
        %632 = vmatmul.mubr.bf16.gmra.mrb[0].mxu0 %v240
        %v633 = vpop.f32.mrb[0].mxu0
        %v634 = vadd.f32 0.0, %v633
        %v635 = vpop.f32.mrb[0].mxu0
        %v636 = vadd.f32 0.0, %v635
        %v637 = vpop.f32.mrb[0].mxu0
        %v638 = vadd.f32 0.0, %v637
        %v639 = vpop.f32.mrb[0].mxu0
        %v640 = vadd.f32 0.0, %v639
        %641 = vdwg.mxu0
        %v642 = vadd.f32 %v518, %v522
        %v643 = vadd.f32 %v642, %v528
        %v644 = vadd.f32 %v643, %v532
        %v645 = vrot.slane %v644, 4
        %v646 = vadd.f32 %v644, %v645
        %v647 = vrot.slane %v646, 2
        %v648 = vadd.f32 %v646, %v647
        %v649 = vrot.slane %v648, 1
        %v650 = vadd.f32 %v648, %v649
        %v651 = vadd.f32 %v520, %v524
        %v652 = vadd.f32 %v651, %v530
        %v653 = vadd.f32 %v652, %v534
        %v654 = vrot.slane %v653, 4
        %v655 = vadd.f32 %v653, %v654
        %v656 = vrot.slane %v655, 2
        %v657 = vadd.f32 %v655, %v656
        %v658 = vrot.slane %v657, 1
        %v659 = vadd.f32 %v657, %v658
        %v660 = vadd.f32 %v571, %v575
        %v661 = vadd.f32 %v660, %v581
        %v662 = vadd.f32 %v661, %v585
        %v663 = vrot.slane %v662, 4
        %v664 = vadd.f32 %v662, %v663
        %v665 = vrot.slane %v664, 2
        %v666 = vadd.f32 %v664, %v665
        %v667 = vrot.slane %v666, 1
        %v668 = vadd.f32 %v666, %v667
        %v669 = vadd.f32 %v573, %v577
        %v670 = vadd.f32 %v669, %v583
        %v671 = vadd.f32 %v670, %v587
        %v672 = vrot.slane %v671, 4
        %v673 = vadd.f32 %v671, %v672
        %v674 = vrot.slane %v673, 2
        %v675 = vadd.f32 %v673, %v674
        %v676 = vrot.slane %v675, 1
        %v677 = vadd.f32 %v675, %v676
        %v678 = vadd.f32 %v624, %v628
        %v679 = vadd.f32 %v678, %v634
        %v680 = vadd.f32 %v679, %v638
        %v681 = vrot.slane %v680, 4
        %v682 = vadd.f32 %v680, %v681
        %v683 = vrot.slane %v682, 2
        %v684 = vadd.f32 %v682, %v683
        %v685 = vrot.slane %v684, 1
        %v686 = vadd.f32 %v684, %v685
        %v687 = vadd.f32 %v626, %v630
        %v688 = vadd.f32 %v687, %v636
        %v689 = vadd.f32 %v688, %v640
        %v690 = vrot.slane %v689, 4
        %v691 = vadd.f32 %v689, %v690
        %v692 = vrot.slane %v691, 2
        %v693 = vadd.f32 %v691, %v692
        %v694 = vrot.slane %v693, 1
        %v695 = vadd.f32 %v693, %v694
        %v696 = vmul.f32 %v518, %v518
        %v697 = vmul.f32 %v520, %v520
        %v698 = vmul.f32 %v571, %v571
        %v699 = vmul.f32 %v573, %v573
        %v700 = vmul.f32 %v624, %v624
        %v701 = vmul.f32 %v626, %v626
        %v702 = vmul.f32 %v522, %v522
        %v703 = vmul.f32 %v524, %v524
        %v704 = vmul.f32 %v575, %v575
        %v705 = vmul.f32 %v577, %v577
        %v706 = vmul.f32 %v628, %v628
        %v707 = vmul.f32 %v630, %v630
        %v708 = vmul.f32 %v528, %v528
        %v709 = vmul.f32 %v530, %v530
        %v710 = vmul.f32 %v581, %v581
        %v711 = vmul.f32 %v583, %v583
        %v712 = vmul.f32 %v634, %v634
        %v713 = vmul.f32 %v636, %v636
        %v714 = vmul.f32 %v532, %v532
        %v715 = vmul.f32 %v534, %v534
        %v716 = vmul.f32 %v585, %v585
        %v717 = vmul.f32 %v587, %v587
        %v718 = vmul.f32 %v638, %v638
        %v719 = vmul.f32 %v640, %v640
        %v720 = vadd.f32 %v696, %v702
        %v721 = vadd.f32 %v720, %v708
        %v722 = vadd.f32 %v721, %v714
        %v723 = vrot.slane %v722, 4
        %v724 = vadd.f32 %v722, %v723
        %v725 = vrot.slane %v724, 2
        %v726 = vadd.f32 %v724, %v725
        %v727 = vrot.slane %v726, 1
        %v728 = vadd.f32 %v726, %v727
        %v729 = vadd.f32 %v697, %v703
        %v730 = vadd.f32 %v729, %v709
        %v731 = vadd.f32 %v730, %v715
        %v732 = vrot.slane %v731, 4
        %v733 = vadd.f32 %v731, %v732
        %v734 = vrot.slane %v733, 2
        %v735 = vadd.f32 %v733, %v734
        %v736 = vrot.slane %v735, 1
        %v737 = vadd.f32 %v735, %v736
        %v738 = vadd.f32 %v698, %v704
        %v739 = vadd.f32 %v738, %v710
        %v740 = vadd.f32 %v739, %v716
        %v741 = vrot.slane %v740, 4
        %v742 = vadd.f32 %v740, %v741
        %v743 = vrot.slane %v742, 2
        %v744 = vadd.f32 %v742, %v743
        %v745 = vrot.slane %v744, 1
        %v746 = vadd.f32 %v744, %v745
        %v747 = vadd.f32 %v699, %v705
        %v748 = vadd.f32 %v747, %v711
        %v749 = vadd.f32 %v748, %v717
        %v750 = vrot.slane %v749, 4
        %v751 = vadd.f32 %v749, %v750
        %v752 = vrot.slane %v751, 2
        %v753 = vadd.f32 %v751, %v752
        %v754 = vrot.slane %v753, 1
        %v755 = vadd.f32 %v753, %v754
        %v756 = vadd.f32 %v700, %v706
        %v757 = vadd.f32 %v756, %v712
        %v758 = vadd.f32 %v757, %v718
        %v759 = vrot.slane %v758, 4
        %v760 = vadd.f32 %v758, %v759
        %v761 = vrot.slane %v760, 2
        %v762 = vadd.f32 %v760, %v761
        %v763 = vrot.slane %v762, 1
        %v764 = vadd.f32 %v762, %v763
        %v765 = vadd.f32 %v701, %v707
        %v766 = vadd.f32 %v765, %v713
        %v767 = vadd.f32 %v766, %v719
        %v768 = vrot.slane %v767, 4
        %v769 = vadd.f32 %v767, %v768
        %v770 = vrot.slane %v769, 2
        %v771 = vadd.f32 %v769, %v770
        %v772 = vrot.slane %v771, 1
        %v773 = vadd.f32 %v771, %v772
        %vm774 = vcmask 1040384
        %v775 = vsel %vm774, %v650, %v728
        %v776 = vsel %vm774, %v659, %v737
        %v777 = vsel %vm774, %v668, %v746
        %v778 = vsel %vm774, %v677, %v755
        %v779 = vsel %vm774, %v686, %v764
        %v780 = vsel %vm774, %v695, %v773
        %v787 = vcombine.low %v775, %v776
        %v788 = vcombine.low %v777, %v778
        %v790 = vunpack.c.l.s4 1983009808
        %v791 = vunpack.c.0.s8 %v790
        %v792 = vlaneseq
        %v793 = vshrl.u32 %v792, 7
        %v794 = vsub.s32 %v791, %v793
        %v795 = vrot.slane %v787, %v794
        %v797 = vunpack.c.l.s4 1983009808
        %v798 = vunpack.c.0.s8 %v797
        %v799 = vlaneseq
        %v800 = vshrl.u32 %v799, 7
        %v801 = vsub.s32 %v798, %v800
        %v802 = vrot.slane %v788, %v801
        %v803 = vcombine.low %v795, %v802
        %v804 = vcombine.low %v779, %v780
        %v806 = vunpack.c.l.s4 1983009808
        %v807 = vunpack.c.0.s8 %v806
        %v808 = vlaneseq
        %v809 = vshrl.u32 %v808, 7
        %v810 = vsub.s32 %v807, %v809
        %v811 = vrot.slane %v804, %v810
        %814 = vst [vmem:[%s176] sm:$0xff] %v803
        %815 = vst [vmem:[%s176 + $0x8] sm:$0xf] %v811
        %s816 = sand.u32 %s75, 1
        %s817 = scalar_lea.sflag [#allocation4], %s816
        %s818 = sand.u32 %s75, 1
        %s819 = smul.addr %s818, 12
        %s820 = scalar_lea.vmem [#allocation7], %s819
        // Predicated region
        $region37: #{tpu_custom_call.1} parent=27 // pred_check
          %p821 = pneg %p85
        $region38: #{tpu_custom_call.1} parent=27 // pred_check_branch
          %823 = sbr.rel (%p821) target = $region40
        $region39: #{tpu_custom_call.1} parent=27 // pred_region
          %s825 = ssub.s32 192, 192
          %826 = vsyncadd %s817, %s825
          %s827 = smul.addr %s20, 6
          %s828 = smul.addr %s827, 32
          %s829 = scalar_lea.hbm %s2, %s828
          %s831 = sshll.u32 %s820, 4
          %s832 = int_to_ptr.vmem [resolvable:$true] %s831
          %834 = dma.vmem_to_hbm [thread:$0]  %s832, 192, %s829, %s817
        $region40: #{tpu_custom_call.1} parent=27 // pred_fallthru
          _
      $region28: #{tpu_custom_call.1} parent=5 // pred_fallthru
        _
      %p835 = scmp.le.s32.totalorder 2, %s15
      // Predicated region
      $region41: #{tpu_custom_call.1} parent=5 // pred_check
        %p836 = pneg %p835
      $region42: #{tpu_custom_call.1} parent=5 // pred_check_branch
        %838 = sbr.rel (%p836) target = $region44
      $region43: #{tpu_custom_call.1} parent=5 // pred_region
        %s839 = ssub.s32 %s15, 2
        // Predicated region
        $region45: #{tpu_custom_call.1} parent=43 // pred_check
          %p840 = pneg %p91
        $region46: #{tpu_custom_call.1} parent=43 // pred_check_branch
          %842 = sbr.rel (%p840) target = $region48
        $region47: #{tpu_custom_call.1} parent=43 // pred_region
          %s843 = sand.u32 %s76, 1
          %s844 = scalar_lea.sflag [#allocation4], %s843
          %s845 = sand.u32 %s76, 1
          %s846 = smul.addr %s845, 12
          %s847 = scalar_lea.vmem [#allocation7], %s846
          %848 = dma.done %s844, 192
        $region48: #{tpu_custom_call.1} parent=43 // pred_fallthru
          _
      $region44: #{tpu_custom_call.1} parent=5 // pred_fallthru
        _
    $region6: #{tpu_custom_call.1} parent=1 // loop_footer
      %s19 = sadd.s32 1, %s15
    $region7: #{tpu_custom_call.1} parent=1 // loop_footer_branch
      %14 = sbr.rel target = $region3
    $region8: #{tpu_custom_call.1} parent=1 // loop_exit
      _
    %849 = vsyncpa [#allocation3], 1
    %s850 = scalar_lea.sflag [#allocation3], 1
    %851 = vsyncpa %s850, 1
    %852 = vsyncpa [#allocation6], 1
    %853 = vsyncpa [#allocation4], 1
    %s854 = scalar_lea.sflag [#allocation4], 1
    %855 = vsyncpa %s854, 1

</llo_original>
